<compile_context>
chip_gen: v6e
topology: v6e:2x2x1
jax: 0.10.0
libtpu: 0.0.40
codegen_flags: <defaults>
</compile_context>

<pallas_src>
import jax
import jax.numpy as jnp
from jax.experimental import pallas as pl
from jax.experimental.pallas import tpu as pltpu

EPS = 1e-5


def residual_block_kernel(x_ref, a1_ref, b1_ref, a2_ref, b2_ref, o_ref, mid_ref):
    # x_ref:  (1, H+2, W*C) f32  row-fused input; rows 0 and H+1 are zero (top/bottom halo)
    # a*_ref: (3, W*C, W*C) bf16 block-banded conv weights (BN folded in)
    # b*_ref: (1, W*C) f32       folded BN bias, tiled per spatial column
    # o_ref:  (1, H, W*C)        output
    # mid_ref:(H+2, W*C) f32     padded intermediate activation scratch
    hp, wc = x_ref.shape[1], x_ref.shape[2]
    h = hp - 2

    def conv3x3_banded(read_band, a_ref):
        acc = jnp.zeros((h, wc), jnp.float32)
        for ky in range(3):  # 3 large MXU matmuls (K = N = W*C)
            lhs = read_band(ky).astype(jnp.bfloat16)
            acc = acc + jnp.dot(lhs, a_ref[ky], preferred_element_type=jnp.float32)
        return acc

    # conv1 (+ folded BN1) + ReLU, all lane-dense (H, W*C)
    out1 = conv3x3_banded(lambda ky: x_ref[0, ky:ky + h, :], a1_ref)
    h1 = jnp.maximum(out1 + b1_ref[...], 0.0)

    # Padded intermediate: write interior directly, zero only the two halo rows.
    # (Done every step so it is safe under a "parallel"/sharded batch grid axis.)
    mid_ref[0:1, :] = jnp.zeros((1, wc), jnp.float32)
    mid_ref[h + 1:h + 2, :] = jnp.zeros((1, wc), jnp.float32)
    mid_ref[1:h + 1, :] = h1

    # conv2 (+ folded BN2) + identity shortcut (sliced right before the add)
    out2 = conv3x3_banded(lambda ky: mid_ref[ky:ky + h, :], a2_ref)
    shortcut = x_ref[0, 1:h + 1, :]
    o_ref[0] = (out2 + b2_ref[...] + shortcut).astype(o_ref.dtype)


def _fold_bn_into_conv(w_oihw, gamma, beta, mean, var):
    """Return HWIO weights with BN scale folded over Cout, plus the folded bias."""
    scale = gamma * jax.lax.rsqrt(var + EPS)                     # (Cout,)
    w_hwio = jnp.transpose(w_oihw, (2, 3, 1, 0)) * scale[None, None, None, :]
    bias = beta - mean * scale
    return w_hwio.astype(jnp.float32), bias.astype(jnp.float32)


def _banded_weights(w_hwio, W):
    """(3,3,Cin,Cout) -> (3, W*Cin, W*Cout) block-banded matrices.

    A_ky[w_in*Cin + ci, w_out*Cout + co] = w[ky, w_in - w_out + 1, ci, co] when the tap is
    in range; out-of-range taps (the left/right 'same' padding) are simply absent (zero).
    """
    _, KW, Cin, Cout = w_hwio.shape
    mats = []
    for ky in range(3):
        m = jnp.zeros((W * Cin, W * Cout), jnp.float32)
        for kx in range(KW):
            shift = jnp.eye(W, W, k=1 - kx, dtype=jnp.float32)   # [w_in, w_out] selector
            m = m + jnp.kron(shift, w_hwio[ky, kx])
        mats.append(m)
    return jnp.stack(mats).astype(jnp.bfloat16)                  # (3, W*Cin, W*Cout)


@jax.jit
def residual_block(x_nchw, params):
    """PyTorch-style entry point: x_nchw is (N, C, H, W); returns (N, C, H, W)."""
    N, C, H, W = x_nchw.shape
    WC = W * C

    # NCHW -> NHWC -> row-fused (N, H+2, W*C) with zero top/bottom halo rows.
    x_nhwc = jnp.transpose(x_nchw, (0, 2, 3, 1)).astype(jnp.float32)
    x_fused = jnp.pad(x_nhwc.reshape(N, H, WC), ((0, 0), (1, 1), (0, 0)))

    # Fold eval-mode BN into conv weights / bias, then build banded matrices (host-side).
    w1_hwio, bias1 = _fold_bn_into_conv(params["w1"], params["g1"], params["b1"],
                                        params["m1"], params["v1"])
    w2_hwio, bias2 = _fold_bn_into_conv(params["w2"], params["g2"], params["b2"],
                                        params["m2"], params["v2"])
    a1 = _banded_weights(w1_hwio, W)
    a2 = _banded_weights(w2_hwio, W)
    b1f = jnp.tile(bias1, W).reshape(1, WC)
    b2f = jnp.tile(bias2, W).reshape(1, WC)

    out_fused = pl.pallas_call(
        residual_block_kernel,
        out_shape=jax.ShapeDtypeStruct((N, H, WC), x_nchw.dtype),
        grid=(N,),
        in_specs=[
            pl.BlockSpec((1, H + 2, WC), lambda n: (n, 0, 0)),   # x (row-fused, padded)
            pl.BlockSpec((3, WC, WC), lambda n: (0, 0, 0)),      # banded conv1 weights
            pl.BlockSpec((1, WC), lambda n: (0, 0)),             # folded bias1
            pl.BlockSpec((3, WC, WC), lambda n: (0, 0, 0)),      # banded conv2 weights
            pl.BlockSpec((1, WC), lambda n: (0, 0)),             # folded bias2
        ],
        out_specs=pl.BlockSpec((1, H, WC), lambda n: (n, 0, 0)),
        scratch_shapes=[pltpu.VMEM((H + 2, WC), jnp.float32)],
        compiler_params=pltpu.CompilerParams(
            dimension_semantics=("parallel",)),
    )(x_fused, a1, b1f, a2, b2f)

    return jnp.transpose(out_fused.reshape(N, H, W, C), (0, 3, 1, 2))


def residual_block_reference(x_nchw, params):
    """Plain-JAX reference mirroring the PyTorch eval-mode forward (f32, highest precision)."""
    dn = ("NCHW", "OIHW", "NCHW")

    def conv(x, w):
        return jax.lax.conv_general_dilated(
            x, w, window_strides=(1, 1), padding=((1, 1), (1, 1)),
            dimension_numbers=dn, precision=jax.lax.Precision.HIGHEST)

    def bn(y, g, b, m, v):
        scale = (g / jnp.sqrt(v + EPS))[None, :, None, None]
        return (y - m[None, :, None, None]) * scale + b[None, :, None, None]

    out = conv(x_nchw, params["w1"])
    out = bn(out, params["g1"], params["b1"], params["m1"], params["v1"])
    out = jnp.maximum(out, 0.0)
    out = conv(out, params["w2"])
    out = bn(out, params["g2"], params["b2"], params["m2"], params["v2"])
    return out + x_nchw


def init_params(key, in_channels, out_channels):
    ks = jax.random.split(key, 10)
    fan_in = in_channels * 9
    return {
        "w1": jax.random.normal(ks[0], (out_channels, in_channels, 3, 3), jnp.float32)
              / jnp.sqrt(fan_in),
        "w2": jax.random.normal(ks[1], (out_channels, out_channels, 3, 3), jnp.float32)
              / jnp.sqrt(out_channels * 9),
        "g1": 1.0 + 0.1 * jax.random.normal(ks[2], (out_channels,), jnp.float32),
        "b1": 0.1 * jax.random.normal(ks[3], (out_channels,), jnp.float32),
        "m1": 0.1 * jax.random.normal(ks[4], (out_channels,), jnp.float32),
        "v1": jax.random.uniform(ks[5], (out_channels,), jnp.float32, 0.5, 1.5),
        "g2": 1.0 + 0.1 * jax.random.normal(ks[6], (out_channels,), jnp.float32),
        "b2": 0.1 * jax.random.normal(ks[7], (out_channels,), jnp.float32),
        "m2": 0.1 * jax.random.normal(ks[8], (out_channels,), jnp.float32),
        "v2": jax.random.uniform(ks[9], (out_channels,), jnp.float32, 0.5, 1.5),
    }


if __name__ == "__main__":
    # downsample=None, stride=1 => in_channels == out_channels, spatial dims preserved.
    # C=8, W=16 makes the fused lane dim W*C exactly 128 (one full vreg lane width).
    N, C, H, W = 2, 8, 16, 16
    key = jax.random.PRNGKey(0)
    k_x, k_p = jax.random.split(key)

    x = jax.random.normal(k_x, (N, C, H, W), jnp.float32)   # NCHW, like PyTorch
    params = init_params(k_p, C, C)

    out = jax.block_until_ready(residual_block(x, params))
    ref = jax.block_until_ready(residual_block_reference(x, params))

    assert out.shape == (N, C, H, W), out.shape
    # bf16 MXU inputs (f32 accumulation) vs an f32 HIGHEST-precision reference -> relaxed tol.
    max_err = jnp.max(jnp.abs(out - ref))
    assert jnp.allclose(out, ref, atol=1e-1, rtol=1e-1), f"max abs err = {max_err}"

    print("KERNEL_OK")
</pallas_src>

<mosaic_0001>
module attributes {stable_mosaic.version = 11 : i64} {
  func.func @residual_block_kernel(%arg0: i32, %arg1: memref<1x18x128xf32, #tpu.memory_space<vmem>>, %arg2: memref<3x128x128xbf16, #tpu.memory_space<vmem>>, %arg3: memref<1x128xf32, #tpu.memory_space<vmem>>, %arg4: memref<3x128x128xbf16, #tpu.memory_space<vmem>>, %arg5: memref<1x128xf32, #tpu.memory_space<vmem>>, %arg6: memref<1x16x128xf32, #tpu.memory_space<vmem>>, %arg7: memref<18x128xf32, #tpu.memory_space<vmem>>) attributes {dimension_semantics = [#tpu.dimension_semantics<parallel>], iteration_bounds = array<i64: 2>, scalar_prefetch = 0 : i64, scratch_operands = 1 : i64, tpu.core_type = #tpu.core_type<tc>, window_params = [{transform_indices = @transform_0, window_bounds = array<i64: 1, 18, 128>}, {pipeline_mode = #tpu.pipeline_mode<synchronous>, transform_indices = @transform_1, window_bounds = array<i64: 3, 128, 128>}, {pipeline_mode = #tpu.pipeline_mode<synchronous>, transform_indices = @transform_2, window_bounds = array<i64: 1, 128>}, {pipeline_mode = #tpu.pipeline_mode<synchronous>, transform_indices = @transform_3, window_bounds = array<i64: 3, 128, 128>}, {pipeline_mode = #tpu.pipeline_mode<synchronous>, transform_indices = @transform_4, window_bounds = array<i64: 1, 128>}, {transform_indices = @transform_5, window_bounds = array<i64: 1, 16, 128>}]} {
    %cst = arith.constant 0.000000e+00 : f32
    %0 = vector.broadcast %cst : f32 to vector<16x128xf32>
    %c0 = arith.constant 0 : index
    %c0_0 = arith.constant 0 : index
    %c0_1 = arith.constant 0 : index
    %1 = vector.load %arg1[%c0, %c0_0, %c0_1] : memref<1x18x128xf32, #tpu.memory_space<vmem>>, vector<1x16x128xf32>
    %2 = vector.shape_cast %1 : vector<1x16x128xf32> to vector<16x128xf32>
    %3 = arith.truncf %2 : vector<16x128xf32> to vector<16x128xbf16>
    %c0_2 = arith.constant 0 : index
    %c0_3 = arith.constant 0 : index
    %c0_4 = arith.constant 0 : index
    %4 = vector.load %arg2[%c0_2, %c0_3, %c0_4] : memref<3x128x128xbf16, #tpu.memory_space<vmem>>, vector<1x128x128xbf16>
    %5 = vector.shape_cast %4 : vector<1x128x128xbf16> to vector<128x128xbf16>
    %cst_5 = arith.constant dense<0.000000e+00> : vector<16x128xf32>
    %6 = tpu.matmul %3, %5, %cst_5 {dimension_numbers = #tpu.dot_dimension_numbers<[1], [0], [0], [1], [0, 0, 1, 1], [], []>} : vector<16x128xbf16>, vector<128x128xbf16>, vector<16x128xf32> -> vector<16x128xf32>
    %7 = arith.addf %0, %6 : vector<16x128xf32>
    %c0_6 = arith.constant 0 : index
    %c1 = arith.constant 1 : index
    %c0_7 = arith.constant 0 : index
    %8 = vector.load %arg1[%c0_6, %c1, %c0_7] : memref<1x18x128xf32, #tpu.memory_space<vmem>>, vector<1x16x128xf32>
    %9 = vector.shape_cast %8 : vector<1x16x128xf32> to vector<16x128xf32>
    %10 = arith.truncf %9 : vector<16x128xf32> to vector<16x128xbf16>
    %c1_8 = arith.constant 1 : index
    %c0_9 = arith.constant 0 : index
    %c0_10 = arith.constant 0 : index
    %11 = vector.load %arg2[%c1_8, %c0_9, %c0_10] : memref<3x128x128xbf16, #tpu.memory_space<vmem>>, vector<1x128x128xbf16>
    %12 = vector.shape_cast %11 : vector<1x128x128xbf16> to vector<128x128xbf16>
    %cst_11 = arith.constant dense<0.000000e+00> : vector<16x128xf32>
    %13 = tpu.matmul %10, %12, %cst_11 {dimension_numbers = #tpu.dot_dimension_numbers<[1], [0], [0], [1], [0, 0, 1, 1], [], []>} : vector<16x128xbf16>, vector<128x128xbf16>, vector<16x128xf32> -> vector<16x128xf32>
    %14 = arith.addf %7, %13 : vector<16x128xf32>
    %c0_12 = arith.constant 0 : index
    %c2 = arith.constant 2 : index
    %c0_13 = arith.constant 0 : index
    %15 = vector.load %arg1[%c0_12, %c2, %c0_13] : memref<1x18x128xf32, #tpu.memory_space<vmem>>, vector<1x16x128xf32>
    %16 = vector.shape_cast %15 : vector<1x16x128xf32> to vector<16x128xf32>
    %17 = arith.truncf %16 : vector<16x128xf32> to vector<16x128xbf16>
    %c2_14 = arith.constant 2 : index
    %c0_15 = arith.constant 0 : index
    %c0_16 = arith.constant 0 : index
    %18 = vector.load %arg2[%c2_14, %c0_15, %c0_16] : memref<3x128x128xbf16, #tpu.memory_space<vmem>>, vector<1x128x128xbf16>
    %19 = vector.shape_cast %18 : vector<1x128x128xbf16> to vector<128x128xbf16>
    %cst_17 = arith.constant dense<0.000000e+00> : vector<16x128xf32>
    %20 = tpu.matmul %17, %19, %cst_17 {dimension_numbers = #tpu.dot_dimension_numbers<[1], [0], [0], [1], [0, 0, 1, 1], [], []>} : vector<16x128xbf16>, vector<128x128xbf16>, vector<16x128xf32> -> vector<16x128xf32>
    %21 = arith.addf %14, %20 : vector<16x128xf32>
    %c0_18 = arith.constant 0 : index
    %c0_19 = arith.constant 0 : index
    %22 = vector.load %arg3[%c0_18, %c0_19] : memref<1x128xf32, #tpu.memory_space<vmem>>, vector<1x128xf32>
    %23 = vector.broadcast %22 : vector<1x128xf32> to vector<16x128xf32>
    %24 = arith.addf %21, %23 : vector<16x128xf32>
    %cst_20 = arith.constant 0.000000e+00 : f32
    %25 = vector.broadcast %cst_20 : f32 to vector<16x128xf32>
    %26 = arith.maximumf %24, %25 : vector<16x128xf32>
    %cst_21 = arith.constant 0.000000e+00 : f32
    %27 = vector.broadcast %cst_21 : f32 to vector<1x128xf32>
    %c0_22 = arith.constant 0 : index
    %c0_23 = arith.constant 0 : index
    %28 = vector.load %arg7[%c0_22, %c0_23] : memref<18x128xf32, #tpu.memory_space<vmem>>, vector<1x128xf32>
    tpu.vector_store %arg7[%c0_22, %c0_23], %27 {strides = array<i32>} : memref<18x128xf32, #tpu.memory_space<vmem>>, vector<1x128xf32>,
    %cst_24 = arith.constant 0.000000e+00 : f32
    %29 = vector.broadcast %cst_24 : f32 to vector<1x128xf32>
    %c17 = arith.constant 17 : index
    %c0_25 = arith.constant 0 : index
    %30 = vector.load %arg7[%c17, %c0_25] : memref<18x128xf32, #tpu.memory_space<vmem>>, vector<1x128xf32>
    tpu.vector_store %arg7[%c17, %c0_25], %29 {strides = array<i32>} : memref<18x128xf32, #tpu.memory_space<vmem>>, vector<1x128xf32>,
    %c1_26 = arith.constant 1 : index
    %c0_27 = arith.constant 0 : index
    %31 = vector.load %arg7[%c1_26, %c0_27] : memref<18x128xf32, #tpu.memory_space<vmem>>, vector<16x128xf32>
    tpu.vector_store %arg7[%c1_26, %c0_27], %26 {strides = array<i32>} : memref<18x128xf32, #tpu.memory_space<vmem>>, vector<16x128xf32>,
    %cst_28 = arith.constant 0.000000e+00 : f32
    %32 = vector.broadcast %cst_28 : f32 to vector<16x128xf32>
    %c0_29 = arith.constant 0 : index
    %c0_30 = arith.constant 0 : index
    %33 = vector.load %arg7[%c0_29, %c0_30] : memref<18x128xf32, #tpu.memory_space<vmem>>, vector<16x128xf32>
    %34 = arith.truncf %33 : vector<16x128xf32> to vector<16x128xbf16>
    %c0_31 = arith.constant 0 : index
    %c0_32 = arith.constant 0 : index
    %c0_33 = arith.constant 0 : index
    %35 = vector.load %arg4[%c0_31, %c0_32, %c0_33] : memref<3x128x128xbf16, #tpu.memory_space<vmem>>, vector<1x128x128xbf16>
    %36 = vector.shape_cast %35 : vector<1x128x128xbf16> to vector<128x128xbf16>
    %cst_34 = arith.constant dense<0.000000e+00> : vector<16x128xf32>
    %37 = tpu.matmul %34, %36, %cst_34 {dimension_numbers = #tpu.dot_dimension_numbers<[1], [0], [0], [1], [0, 0, 1, 1], [], []>} : vector<16x128xbf16>, vector<128x128xbf16>, vector<16x128xf32> -> vector<16x128xf32>
    %38 = arith.addf %32, %37 : vector<16x128xf32>
    %c1_35 = arith.constant 1 : index
    %c0_36 = arith.constant 0 : index
    %39 = vector.load %arg7[%c1_35, %c0_36] : memref<18x128xf32, #tpu.memory_space<vmem>>, vector<16x128xf32>
    %40 = arith.truncf %39 : vector<16x128xf32> to vector<16x128xbf16>
    %c1_37 = arith.constant 1 : index
    %c0_38 = arith.constant 0 : index
    %c0_39 = arith.constant 0 : index
    %41 = vector.load %arg4[%c1_37, %c0_38, %c0_39] : memref<3x128x128xbf16, #tpu.memory_space<vmem>>, vector<1x128x128xbf16>
    %42 = vector.shape_cast %41 : vector<1x128x128xbf16> to vector<128x128xbf16>
    %cst_40 = arith.constant dense<0.000000e+00> : vector<16x128xf32>
    %43 = tpu.matmul %40, %42, %cst_40 {dimension_numbers = #tpu.dot_dimension_numbers<[1], [0], [0], [1], [0, 0, 1, 1], [], []>} : vector<16x128xbf16>, vector<128x128xbf16>, vector<16x128xf32> -> vector<16x128xf32>
    %44 = arith.addf %38, %43 : vector<16x128xf32>
    %c2_41 = arith.constant 2 : index
    %c0_42 = arith.constant 0 : index
    %45 = vector.load %arg7[%c2_41, %c0_42] : memref<18x128xf32, #tpu.memory_space<vmem>>, vector<16x128xf32>
    %46 = arith.truncf %45 : vector<16x128xf32> to vector<16x128xbf16>
    %c2_43 = arith.constant 2 : index
    %c0_44 = arith.constant 0 : index
    %c0_45 = arith.constant 0 : index
    %47 = vector.load %arg4[%c2_43, %c0_44, %c0_45] : memref<3x128x128xbf16, #tpu.memory_space<vmem>>, vector<1x128x128xbf16>
    %48 = vector.shape_cast %47 : vector<1x128x128xbf16> to vector<128x128xbf16>
    %cst_46 = arith.constant dense<0.000000e+00> : vector<16x128xf32>
    %49 = tpu.matmul %46, %48, %cst_46 {dimension_numbers = #tpu.dot_dimension_numbers<[1], [0], [0], [1], [0, 0, 1, 1], [], []>} : vector<16x128xbf16>, vector<128x128xbf16>, vector<16x128xf32> -> vector<16x128xf32>
    %50 = arith.addf %44, %49 : vector<16x128xf32>
    %c0_47 = arith.constant 0 : index
    %c1_48 = arith.constant 1 : index
    %c0_49 = arith.constant 0 : index
    %51 = vector.load %arg1[%c0_47, %c1_48, %c0_49] : memref<1x18x128xf32, #tpu.memory_space<vmem>>, vector<1x16x128xf32>
    %52 = vector.shape_cast %51 : vector<1x16x128xf32> to vector<16x128xf32>
    %c0_50 = arith.constant 0 : index
    %c0_51 = arith.constant 0 : index
    %53 = vector.load %arg5[%c0_50, %c0_51] : memref<1x128xf32, #tpu.memory_space<vmem>>, vector<1x128xf32>
    %54 = vector.broadcast %53 : vector<1x128xf32> to vector<16x128xf32>
    %55 = arith.addf %50, %54 : vector<16x128xf32>
    %56 = arith.addf %55, %52 : vector<16x128xf32>
    %c0_52 = arith.constant 0 : index
    %c0_53 = arith.constant 0 : index
    %c0_54 = arith.constant 0 : index
    %57 = vector.load %arg6[%c0_52, %c0_53, %c0_54] : memref<1x16x128xf32, #tpu.memory_space<vmem>>, vector<1x16x128xf32>
    %58 = vector.shape_cast %57 : vector<1x16x128xf32> to vector<16x128xf32>
    %59 = vector.shape_cast %56 : vector<16x128xf32> to vector<1x16x128xf32>
    tpu.vector_store %arg6[%c0_52, %c0_53, %c0_54], %59 {strides = array<i32>} : memref<1x16x128xf32, #tpu.memory_space<vmem>>, vector<1x16x128xf32>,
    return
  }
  func.func @transform_0(%arg0: i32) -> (i32, i32, i32) {
    %c0_i32 = arith.constant 0 : i32
    %c0_i32_0 = arith.constant 0 : i32
    %c0_i32_1 = arith.constant 0 : i32
    return %arg0, %c0_i32, %c0_i32_0 : i32, i32, i32
  }
  func.func @transform_1(%arg0: i32) -> (i32, i32, i32) {
    %c0_i32 = arith.constant 0 : i32
    %c0_i32_0 = arith.constant 0 : i32
    %c0_i32_1 = arith.constant 0 : i32
    %c0_i32_2 = arith.constant 0 : i32
    return %c0_i32, %c0_i32_0, %c0_i32_1 : i32, i32, i32
  }
  func.func @transform_2(%arg0: i32) -> (i32, i32) {
    %c0_i32 = arith.constant 0 : i32
    %c0_i32_0 = arith.constant 0 : i32
    %c0_i32_1 = arith.constant 0 : i32
    return %c0_i32, %c0_i32_0 : i32, i32
  }
  func.func @transform_3(%arg0: i32) -> (i32, i32, i32) {
    %c0_i32 = arith.constant 0 : i32
    %c0_i32_0 = arith.constant 0 : i32
    %c0_i32_1 = arith.constant 0 : i32
    %c0_i32_2 = arith.constant 0 : i32
    return %c0_i32, %c0_i32_0, %c0_i32_1 : i32, i32, i32
  }
  func.func @transform_4(%arg0: i32) -> (i32, i32) {
    %c0_i32 = arith.constant 0 : i32
    %c0_i32_0 = arith.constant 0 : i32
    %c0_i32_1 = arith.constant 0 : i32
    return %c0_i32, %c0_i32_0 : i32, i32
  }
  func.func @transform_5(%arg0: i32) -> (i32, i32, i32) {
    %c0_i32 = arith.constant 0 : i32
    %c0_i32_0 = arith.constant 0 : i32
    %c0_i32_1 = arith.constant 0 : i32
    return %arg0, %c0_i32, %c0_i32_0 : i32, i32, i32
  }
}

</mosaic_0001>

<llo_original>
// kernel: tile.13
$region0: #{tile.13}
  #allocation0 [shape = 's32[1]{0}', space=sflag, size = 0x4, scoped, tag = 'scoped memory for tile.13']
  %s0 = inlined_call_operand.vmem [shape: f32[8], index: 0, kind: input, shape index: {}]
  %s1 = inlined_call_operand.vmem [shape: f32[16,8], index: 1, kind: output, shape index: {}]
  // Predicated region
  $region2: #{tile.13} parent=0 // pred_check
    _
  $region3: #{tile.13} parent=0 // pred_check_branch
    %3 = sbr.rel (0) target = $region5
  $region4: #{tile.13} parent=0 // pred_region
    _
  $region5: #{tile.13} parent=0 // pred_fallthru
    _
  %v4 = vld [vmem:[%s0] ss:$0 sm:$0xff]
  %5 = vst [vmem:[%s1] sm:$0xff] %v4
  %s6 = scalar_lea.vmem %s1, 8
  %7 = vst [vmem:[%s6] sm:$0xff] %v4

// kernel: tile.14
$region0: #{tile.14}
  %s0 = inlined_call_operand.vmem [shape: f32[16,8], index: 0, kind: input, shape index: {}]
  %s1 = inlined_call_operand.vmem [shape: f32[1,128], index: 1, kind: output, shape index: {}]
  $region1: #{tile.14} parent=0
    #allocation0 [shape = 'u8[4096]{0}', space=vmem, size = 0x1000, scoped, tag = 'scoped mem for output reshape']
    %v2 = vld [vmem:[%s0] sm:$0x1]
    %vm3 = vcmask 64512
    %4 = vst.msk [vmem:[#allocation0] sm:$0x1] %vm3, %v2
    %s5 = scalar_lea.vmem %s0, 15
    %v6 = vld [vmem:[%s5] sm:$0x1]
    %7 = vrot.lane.b32.xlu0 %v6, 120
    %v8 = vpop.permute.xlu0 %7
    %vm9 = vcmask 1048512
    %10 = vst.msk [vmem:[#allocation0] sm:$0x1] %vm9, %v8
    %s11 = scalar_lea.vmem %s0, 14
    %v12 = vld [vmem:[%s11] sm:$0x1]
    %13 = vrot.lane.b32.xlu0 %v12, 112
    %v14 = vpop.permute.xlu0 %13
    %vm15 = vcmask 982912
    %16 = vst.msk [vmem:[#allocation0] sm:$0x1] %vm15, %v14
    %s17 = scalar_lea.vmem %s0, 13
    %v18 = vld [vmem:[%s17] sm:$0x1]
    %19 = vrot.lane.b32.xlu0 %v18, 104
    %v20 = vpop.permute.xlu0 %19
    %vm21 = vcmask 917312
    %22 = vst.msk [vmem:[#allocation0] sm:$0x1] %vm21, %v20
    %s23 = scalar_lea.vmem %s0, 12
    %v24 = vld [vmem:[%s23] sm:$0x1]
    %25 = vrot.lane.b32.xlu0 %v24, 96
    %v26 = vpop.permute.xlu0 %25
    %vm27 = vcmask 851712
    %28 = vst.msk [vmem:[#allocation0] sm:$0x1] %vm27, %v26
    %s29 = scalar_lea.vmem %s0, 11
    %v30 = vld [vmem:[%s29] sm:$0x1]
    %31 = vrot.lane.b32.xlu0 %v30, 88
    %v32 = vpop.permute.xlu0 %31
    %vm33 = vcmask 786112
    %34 = vst.msk [vmem:[#allocation0] sm:$0x1] %vm33, %v32
    %s35 = scalar_lea.vmem %s0, 10
    %v36 = vld [vmem:[%s35] sm:$0x1]
    %37 = vrot.lane.b32.xlu0 %v36, 80
    %v38 = vpop.permute.xlu0 %37
    %vm39 = vcmask 720512
    %40 = vst.msk [vmem:[#allocation0] sm:$0x1] %vm39, %v38
    %s41 = scalar_lea.vmem %s0, 9
    %v42 = vld [vmem:[%s41] sm:$0x1]
    %43 = vrot.lane.b32.xlu0 %v42, 72
    %v44 = vpop.permute.xlu0 %43
    %vm45 = vcmask 654912
    %46 = vst.msk [vmem:[#allocation0] sm:$0x1] %vm45, %v44
    %s47 = scalar_lea.vmem %s0, 8
    %v48 = vld [vmem:[%s47] sm:$0x1]
    %49 = vrot.lane.b32.xlu0 %v48, 64
    %v50 = vpop.permute.xlu0 %49
    %vm51 = vcmask 589312
    %52 = vst.msk [vmem:[#allocation0] sm:$0x1] %vm51, %v50
    %s53 = scalar_lea.vmem %s0, 7
    %v54 = vld [vmem:[%s53] sm:$0x1]
    %55 = vrot.lane.b32.xlu0 %v54, 56
    %v56 = vpop.permute.xlu0 %55
    %vm57 = vcmask 523712
    %58 = vst.msk [vmem:[#allocation0] sm:$0x1] %vm57, %v56
    %s59 = scalar_lea.vmem %s0, 6
    %v60 = vld [vmem:[%s59] sm:$0x1]
    %61 = vrot.lane.b32.xlu0 %v60, 48
    %v62 = vpop.permute.xlu0 %61
    %vm63 = vcmask 458112
    %64 = vst.msk [vmem:[#allocation0] sm:$0x1] %vm63, %v62
    %s65 = scalar_lea.vmem %s0, 5
    %v66 = vld [vmem:[%s65] sm:$0x1]
    %67 = vrot.lane.b32.xlu0 %v66, 40
    %v68 = vpop.permute.xlu0 %67
    %vm69 = vcmask 392512
    %70 = vst.msk [vmem:[#allocation0] sm:$0x1] %vm69, %v68
    %s71 = scalar_lea.vmem %s0, 4
    %v72 = vld [vmem:[%s71] sm:$0x1]
    %73 = vrot.lane.b32.xlu0 %v72, 32
    %v74 = vpop.permute.xlu0 %73
    %vm75 = vcmask 326912
    %76 = vst.msk [vmem:[#allocation0] sm:$0x1] %vm75, %v74
    %s77 = scalar_lea.vmem %s0, 3
    %v78 = vld [vmem:[%s77] sm:$0x1]
    %79 = vrot.lane.b32.xlu0 %v78, 24
    %v80 = vpop.permute.xlu0 %79
    %vm81 = vcmask 261312
    %82 = vst.msk [vmem:[#allocation0] sm:$0x1] %vm81, %v80
    %s83 = scalar_lea.vmem %s0, 2
    %v84 = vld [vmem:[%s83] sm:$0x1]
    %85 = vrot.lane.b32.xlu0 %v84, 16
    %v86 = vpop.permute.xlu0 %85
    %vm87 = vcmask 195712
    %88 = vst.msk [vmem:[#allocation0] sm:$0x1] %vm87, %v86
    %s89 = scalar_lea.vmem %s0, 1
    %v90 = vld [vmem:[%s89] sm:$0x1]
    %91 = vrot.lane.b32.xlu0 %v90, 8
    %v92 = vpop.permute.xlu0 %91
    %vm93 = vcmask 130112
    %94 = vst.msk [vmem:[#allocation0] sm:$0x1] %vm93, %v92
    %s96 = sshll.u32 1, 1
    %s97 = ssub.s32 %s96, 1
    %v99 = vld [vmem:[#allocation0] sm:%s97]
    %s100 = sshll.u32 1, 1
    %s101 = ssub.s32 %s100, 1
    %102 = vst [vmem:[%s1] sm:%s101] %v99

// kernel: residual_block.1
$region0: #{residual_block.1}
  #allocation0 [shape = 'u32[]', space=smem, size = 0x4, offset = 0x4, fixed_abs, tag = 'smem constant byte address 0x4 - core index']
  #allocation1 [shape = 'u32[144,128]{1,0:T(1,128)}', space=vmem, size = 0x12000, scoped, tag = 'internal scratch']
  #allocation2 [shape = 'f32[18,128]{1,0:T(8,128)}', space=vmem, size = 0x3000, scoped, tag = 'scratch operand']
  %s0 = inlined_call_operand.vmem [shape: f32[2,18,128], index: 0, kind: input, shape index: {}]
  %s1 = inlined_call_operand.vmem [shape: bf16[3,128,128], index: 1, kind: input, shape index: {}]
  %s2 = inlined_call_operand.vmem [shape: f32[1,128], index: 2, kind: input, shape index: {}]
  %s3 = inlined_call_operand.vmem [shape: bf16[3,128,128], index: 3, kind: input, shape index: {}]
  %s4 = inlined_call_operand.vmem [shape: f32[1,128], index: 4, kind: input, shape index: {}]
  %s5 = inlined_call_operand.vmem [shape: f32[2,16,128], index: 5, kind: output, shape index: {}]
  %s6 = sld [smem:[#allocation0]]
  $region53: #{residual_block.1} parent=0
    _
  %s8 = ssub.s32 1, %s6
  %s9 = scalar_select 0, %s8, %s6
  loop: start=0, step=1, limit=4
  $region2: #{residual_block.1} parent=0 // loop_pre_header
    _
  $region3: #{residual_block.1} parent=0 // loop_header
    %s11 = sphi 0, %s15
    %p12 = scmp.ge.s32.totalorder %s11, 4
    %s21 = sphi 0, %s23
    %s24 = sphi 0, %s21
    %s25 = sphi 0, %s24
    %s41 = sphi 0, %s25
    %s45 = sphi 0, %s45
    %s47 = sphi 0, %s45
    %s48 = sphi 0, %s47
    %s62 = sphi 0, %s48
    %s66 = sphi 0, %s66
    %s68 = sphi 0, %s66
    %s69 = sphi 0, %s68
    %s83 = sphi 0, %s69
    %s87 = sphi 0, %s87
    %s89 = sphi 0, %s87
    %s90 = sphi 0, %s89
    %s104 = sphi 0, %s90
    %s108 = sphi 0, %s108
    %s110 = sphi 0, %s108
    %s111 = sphi 0, %s110
    %s125 = sphi 0, %s111
    %s131 = sphi 0, %s133
    %s134 = sphi 0, %s131
    %s135 = sphi 0, %s134
    %s151 = sphi 0, %s135
  $region4: #{residual_block.1} parent=0 // loop_header_branch
    %14 = sbr.rel (%p12) target = $region8
  $region5: #{residual_block.1} parent=0 // loop_body
    %s16 = ssub.s32 %s11, 1
    %s17 = ssub.s32 %s11, 2
    %s18 = sadd.s32 %s11, 1
    %s19 = ssub.s32 %s11, %s18
    %p20 = scmp.eq.s32.totalorder %s19, 0
    %s22 = sadd.s32 %s21, 1
    %s23 = scalar_select %p20, %s21, %s22
    %p26 = pneg %p20
    %p27 = scmp.eq.s32.totalorder %s11, 1
    %p28 = por %p26, %p27
    %p29 = scmp.ne.s32.totalorder %s21, %s24
    %p30 = scmp.eq.s32.totalorder %s11, 0
    %p31 = por %p29, %p30
    %p32 = scmp.ne.s32.totalorder %s21, %s24
    %p33 = scmp.eq.s32.totalorder %s16, 1
    %p34 = por %p32, %p33
    %p35 = scmp.ne.s32.totalorder %s24, %s25
    %p36 = scmp.eq.s32.totalorder %s16, 0
    %p37 = por %p35, %p36
    %p38 = scmp.ne.s32.totalorder %s24, %s25
    %p39 = scmp.eq.s32.totalorder %s17, 1
    %p40 = por %p38, %p39
    %p42 = scmp.ne.s32.totalorder %s25, %s41
    %p43 = scmp.eq.s32.totalorder %s17, 0
    %p44 = por %p42, %p43
    %s46 = sadd.s32 %s45, 1
    %p49 = scmp.eq.s32.totalorder %s11, 1
    %p50 = scmp.ne.s32.totalorder %s45, %s47
    %p51 = scmp.eq.s32.totalorder %s11, 0
    %p52 = por %p50, %p51
    %p53 = scmp.ne.s32.totalorder %s45, %s47
    %p54 = scmp.eq.s32.totalorder %s16, 1
    %p55 = por %p53, %p54
    %p56 = scmp.ne.s32.totalorder %s47, %s48
    %p57 = scmp.eq.s32.totalorder %s16, 0
    %p58 = por %p56, %p57
    %p59 = scmp.ne.s32.totalorder %s47, %s48
    %p60 = scmp.eq.s32.totalorder %s17, 1
    %p61 = por %p59, %p60
    %p63 = scmp.ne.s32.totalorder %s48, %s62
    %p64 = scmp.eq.s32.totalorder %s17, 0
    %p65 = por %p63, %p64
    %s67 = sadd.s32 %s66, 1
    %p70 = scmp.eq.s32.totalorder %s11, 1
    %p71 = scmp.ne.s32.totalorder %s66, %s68
    %p72 = scmp.eq.s32.totalorder %s11, 0
    %p73 = por %p71, %p72
    %p74 = scmp.ne.s32.totalorder %s66, %s68
    %p75 = scmp.eq.s32.totalorder %s16, 1
    %p76 = por %p74, %p75
    %p77 = scmp.ne.s32.totalorder %s68, %s69
    %p78 = scmp.eq.s32.totalorder %s16, 0
    %p79 = por %p77, %p78
    %p80 = scmp.ne.s32.totalorder %s68, %s69
    %p81 = scmp.eq.s32.totalorder %s17, 1
    %p82 = por %p80, %p81
    %p84 = scmp.ne.s32.totalorder %s69, %s83
    %p85 = scmp.eq.s32.totalorder %s17, 0
    %p86 = por %p84, %p85
    %s88 = sadd.s32 %s87, 1
    %p91 = scmp.eq.s32.totalorder %s11, 1
    %p92 = scmp.ne.s32.totalorder %s87, %s89
    %p93 = scmp.eq.s32.totalorder %s11, 0
    %p94 = por %p92, %p93
    %p95 = scmp.ne.s32.totalorder %s87, %s89
    %p96 = scmp.eq.s32.totalorder %s16, 1
    %p97 = por %p95, %p96
    %p98 = scmp.ne.s32.totalorder %s89, %s90
    %p99 = scmp.eq.s32.totalorder %s16, 0
    %p100 = por %p98, %p99
    %p101 = scmp.ne.s32.totalorder %s89, %s90
    %p102 = scmp.eq.s32.totalorder %s17, 1
    %p103 = por %p101, %p102
    %p105 = scmp.ne.s32.totalorder %s90, %s104
    %p106 = scmp.eq.s32.totalorder %s17, 0
    %p107 = por %p105, %p106
    %s109 = sadd.s32 %s108, 1
    %p112 = scmp.eq.s32.totalorder %s11, 1
    %p113 = scmp.ne.s32.totalorder %s108, %s110
    %p114 = scmp.eq.s32.totalorder %s11, 0
    %p115 = por %p113, %p114
    %p116 = scmp.ne.s32.totalorder %s108, %s110
    %p117 = scmp.eq.s32.totalorder %s16, 1
    %p118 = por %p116, %p117
    %p119 = scmp.ne.s32.totalorder %s110, %s111
    %p120 = scmp.eq.s32.totalorder %s16, 0
    %p121 = por %p119, %p120
    %p122 = scmp.ne.s32.totalorder %s110, %s111
    %p123 = scmp.eq.s32.totalorder %s17, 1
    %p124 = por %p122, %p123
    %p126 = scmp.ne.s32.totalorder %s111, %s125
    %p127 = scmp.eq.s32.totalorder %s17, 0
    %p128 = por %p126, %p127
    %s129 = ssub.s32 %s11, %s18
    %p130 = scmp.eq.s32.totalorder %s129, 0
    %s132 = sadd.s32 %s131, 1
    %s133 = scalar_select %p130, %s131, %s132
    %p136 = pneg %p130
    %p137 = scmp.eq.s32.totalorder %s11, 1
    %p138 = por %p136, %p137
    %p139 = scmp.ne.s32.totalorder %s131, %s134
    %p140 = scmp.eq.s32.totalorder %s11, 0
    %p141 = por %p139, %p140
    %p142 = scmp.ne.s32.totalorder %s131, %s134
    %p143 = scmp.eq.s32.totalorder %s16, 1
    %p144 = por %p142, %p143
    %p145 = scmp.ne.s32.totalorder %s134, %s135
    %p146 = scmp.eq.s32.totalorder %s16, 0
    %p147 = por %p145, %p146
    %p148 = scmp.ne.s32.totalorder %s134, %s135
    %p149 = scmp.eq.s32.totalorder %s17, 1
    %p150 = por %p148, %p149
    %p152 = scmp.ne.s32.totalorder %s135, %s151
    %p153 = scmp.eq.s32.totalorder %s17, 0
    %p154 = por %p152, %p153
    %p155 = scmp.le.s32.totalorder 1, %s11
    %p156 = scmp.lt.s32.totalorder %s11, 3
    %p157 = pnand %p155, %p156
    %p158 = pneg %p157
    // Predicated region
    $region9: #{residual_block.1} parent=5 // pred_check
      _
    $region10: #{residual_block.1} parent=5 // pred_check_branch
      %160 = sbr.rel (%p157) target = $region12
    $region11: #{residual_block.1} parent=5 // pred_region
      %s161 = ssub.s32 %s11, 1
      // Predicated region
      $region13: #{residual_block.1} parent=11 // pred_check
        %p162 = pneg %p58
      $region14: #{residual_block.1} parent=11 // pred_check_branch
        %164 = sbr.rel (%p162) target = $region16
      $region15: #{residual_block.1} parent=11 // pred_region
        _
      $region16: #{residual_block.1} parent=11 // pred_fallthru
        _
      // Predicated region
      $region17: #{residual_block.1} parent=11 // pred_check
        %p165 = pneg %p79
      $region18: #{residual_block.1} parent=11 // pred_check_branch
        %167 = sbr.rel (%p165) target = $region20
      $region19: #{residual_block.1} parent=11 // pred_region
        _
      $region20: #{residual_block.1} parent=11 // pred_fallthru
        _
      // Predicated region
      $region21: #{residual_block.1} parent=11 // pred_check
        %p168 = pneg %p100
      $region22: #{residual_block.1} parent=11 // pred_check_branch
        %170 = sbr.rel (%p168) target = $region24
      $region23: #{residual_block.1} parent=11 // pred_region
        _
      $region24: #{residual_block.1} parent=11 // pred_fallthru
        _
      // Predicated region
      $region25: #{residual_block.1} parent=11 // pred_check
        %p171 = pneg %p121
      $region26: #{residual_block.1} parent=11 // pred_check_branch
        %173 = sbr.rel (%p171) target = $region28
      $region27: #{residual_block.1} parent=11 // pred_region
        _
      $region28: #{residual_block.1} parent=11 // pred_fallthru
        _
    $region12: #{residual_block.1} parent=5 // pred_fallthru
      _
    %p174 = scmp.lt.s32.totalorder %s11, 2
    // Predicated region
    $region29: #{residual_block.1} parent=5 // pred_check
      %p175 = pneg %p174
    $region30: #{residual_block.1} parent=5 // pred_check_branch
      %177 = sbr.rel (%p175) target = $region32
    $region31: #{residual_block.1} parent=5 // pred_region
      // Predicated region
      $region33: #{residual_block.1} parent=31 // pred_check
        %p178 = pneg %p31
      $region34: #{residual_block.1} parent=31 // pred_check_branch
        %180 = sbr.rel (%p178) target = $region36
      $region35: #{residual_block.1} parent=31 // pred_region
        %p181 = scmp.lt.s32.totalorder %s11, 1
        %s182 = scalar_select %p181, %s11, 1
        %s183 = smul.addr %s182, 3
        %s184 = smul.addr %s183, 8
        %s185 = scalar_lea.vmem %s0, %s184
      $region36: #{residual_block.1} parent=31 // pred_fallthru
        _
    $region32: #{residual_block.1} parent=5 // pred_fallthru
      _
    %p186 = scmp.le.s32.totalorder 1, %s11
    %p187 = scmp.lt.s32.totalorder %s11, 3
    %p188 = pnand %p186, %p187
    %p189 = pneg %p188
    // Predicated region
    $region37: #{residual_block.1} parent=5 // pred_check
      _
    $region38: #{residual_block.1} parent=5 // pred_check_branch
      %191 = sbr.rel (%p188) target = $region40
    $region39: #{residual_block.1} parent=5 // pred_region
      %s192 = ssub.s32 %s11, 1
      %p193 = scmp.lt.s32.totalorder %s16, 1
      %s194 = scalar_select %p193, %s16, 1
      %s195 = smul.addr %s194, 3
      %s196 = smul.addr %s195, 8
      %s197 = scalar_lea.vmem %s0, %s196
      %p198 = pneg %p37
      %p199 = pneg %p34
      %p200 = pneg %p58
      %p201 = pneg %p55
      %p202 = pneg %p79
      %p203 = pneg %p76
      %p204 = pneg %p100
      %p205 = pneg %p97
      %p206 = pneg %p121
      %p207 = pneg %p118
      %p208 = pneg %p147
      %p209 = pneg %p144
      %p210 = scmp.lt.s32.totalorder %s16, 1
      %s211 = scalar_select %p210, %s16, 1
      %s212 = smul.addr %s211, 2
      %s213 = smul.addr %s212, 8
      %s214 = scalar_lea.vmem %s5, %s213
      %p215 = scmp.lt.s32.totalorder %s16, 1
      %s216 = scalar_select %p215, %s16, 1
      %s217 = smul.addr %s216, 3
      %s218 = smul.addr %s217, 8
      %s219 = scalar_lea.vmem %s0, %s218
      %p220 = scmp.lt.s32.totalorder %s16, 1
      %s221 = scalar_select %p220, %s16, 1
      %s222 = smul.addr %s221, 2
      %s223 = smul.addr %s222, 8
      %s224 = scalar_lea.vmem %s5, %s223
      %v226 = vld [vmem:[%s219] sm:$0xff]
      %v227 = vld [vmem:[%s219 + $0x8] sm:$0xff]
      %v228 = vpack.c.bf16 %v227, %v226
      %v229 = vld [vmem:[%s1] sm:$0xf]
      %v230 = vld [vmem:[%s1 + $0x4] sm:$0xf]
      %v231 = vld [vmem:[%s1 + $0x8] sm:$0xf]
      %v232 = vld [vmem:[%s1 + $0xc] sm:$0xf]
      %v233 = vld [vmem:[%s1 + $0x10] sm:$0xf]
      %v234 = vld [vmem:[%s1 + $0x14] sm:$0xf]
      %v235 = vld [vmem:[%s1 + $0x18] sm:$0xf]
      %v236 = vld [vmem:[%s1 + $0x1c] sm:$0xf]
      %v237 = vld [vmem:[%s1 + $0x20] sm:$0xf]
      %v238 = vld [vmem:[%s1 + $0x24] sm:$0xf]
      %v239 = vld [vmem:[%s1 + $0x28] sm:$0xf]
      %v240 = vld [vmem:[%s1 + $0x2c] sm:$0xf]
      %v241 = vld [vmem:[%s1 + $0x30] sm:$0xf]
      %v242 = vld [vmem:[%s1 + $0x34] sm:$0xf]
      %v243 = vld [vmem:[%s1 + $0x38] sm:$0xf]
      %v244 = vld [vmem:[%s1 + $0x3c] sm:$0xf]
      %v245 = vld [vmem:[%s219 + $0x1] sm:$0xff]
      %v246 = vld [vmem:[%s219 + $0x9] sm:$0xff]
      %v247 = vpack.c.bf16 %v246, %v245
      %s248 = scalar_lea.vmem %s1, 64
      %v249 = vld [vmem:[%s248] sm:$0xf]
      %v250 = vld [vmem:[%s248 + $0x4] sm:$0xf]
      %v251 = vld [vmem:[%s248 + $0x8] sm:$0xf]
      %v252 = vld [vmem:[%s248 + $0xc] sm:$0xf]
      %v253 = vld [vmem:[%s248 + $0x10] sm:$0xf]
      %v254 = vld [vmem:[%s248 + $0x14] sm:$0xf]
      %v255 = vld [vmem:[%s248 + $0x18] sm:$0xf]
      %v256 = vld [vmem:[%s248 + $0x1c] sm:$0xf]
      %v257 = vld [vmem:[%s248 + $0x20] sm:$0xf]
      %v258 = vld [vmem:[%s248 + $0x24] sm:$0xf]
      %v259 = vld [vmem:[%s248 + $0x28] sm:$0xf]
      %v260 = vld [vmem:[%s248 + $0x2c] sm:$0xf]
      %v261 = vld [vmem:[%s248 + $0x30] sm:$0xf]
      %v262 = vld [vmem:[%s248 + $0x34] sm:$0xf]
      %v263 = vld [vmem:[%s248 + $0x38] sm:$0xf]
      %v264 = vld [vmem:[%s248 + $0x3c] sm:$0xf]
      %v281 = vunpack.c.l.b16 %v249
      %v282 = vunpack.c.l.b16 %v250
      %v283 = vunpack.c.l.b16 %v251
      %v284 = vunpack.c.l.b16 %v252
      %v285 = vunpack.c.l.b16 %v253
      %v286 = vunpack.c.l.b16 %v254
      %v287 = vunpack.c.l.b16 %v255
      %v288 = vunpack.c.l.b16 %v256
      %v289 = vunpack.c.l.b16 %v257
      %v290 = vunpack.c.l.b16 %v258
      %v291 = vunpack.c.l.b16 %v259
      %v292 = vunpack.c.l.b16 %v260
      %v293 = vunpack.c.l.b16 %v261
      %v294 = vunpack.c.l.b16 %v262
      %v295 = vunpack.c.l.b16 %v263
      %v296 = vunpack.c.l.b16 %v264
      %v297 = vpack.c.b16 %v282, %v281
      %v298 = vpack.c.b16 %v284, %v283
      %v299 = vpack.c.b16 %v286, %v285
      %v300 = vpack.c.b16 %v288, %v287
      %v301 = vpack.c.b16 %v290, %v289
      %v302 = vpack.c.b16 %v292, %v291
      %v303 = vpack.c.b16 %v294, %v293
      %v304 = vpack.c.b16 %v296, %v295
      %313 = vmatprep.subr.bf16.mxu0 0
      %314 = vmatpush1.bf16.msra.mxu0 %v304
      %315 = vmatprep.subr.bf16.mxu0 0
      %316 = vmatpush1.bf16.msra.mxu0 %v303
      %317 = vmatprep.subr.bf16.mxu0 0
      %318 = vmatpush1.bf16.msra.mxu0 %v302
      %319 = vmatprep.subr.bf16.mxu0 0
      %320 = vmatpush1.bf16.msra.mxu0 %v301
      %321 = vmatprep.subr.bf16.mxu0 0
      %322 = vmatpush1.bf16.msra.mxu0 %v300
      %323 = vmatprep.subr.bf16.mxu0 0
      %324 = vmatpush1.bf16.msra.mxu0 %v299
      %325 = vmatprep.subr.bf16.mxu0 0
      %326 = vmatpush1.bf16.msra.mxu0 %v298
      %327 = vmatprep.subr.bf16.mxu0 0
      %328 = vmatpush1.bf16.msra.mxu0 %v297
      %329 = vmatprep.subr.bf16.mxu0 0
      %330 = vmatpush2.bf16.msra.mxu0 0
      %331 = vmatprep.subr.bf16.mxu0 0
      %332 = vmatpush2.bf16.msra.mxu0 0
      %333 = vmatprep.subr.bf16.mxu0 0
      %334 = vmatpush2.bf16.msra.mxu0 0
      %335 = vmatprep.subr.bf16.mxu0 0
      %336 = vmatpush2.bf16.msra.mxu0 0
      %337 = vmatprep.subr.bf16.mxu0 0
      %338 = vmatpush2.bf16.msra.mxu0 0
      %339 = vmatprep.subr.bf16.mxu0 0
      %340 = vmatpush2.bf16.msra.mxu0 0
      %341 = vmatprep.subr.bf16.mxu0 0
      %342 = vmatpush2.bf16.msra.mxu0 0
      %343 = vmatprep.subr.bf16.mxu0 0
      %344 = vmatpush2.bf16.msra.mxu0 0
      %345 = vmatprep.mubr.bf16.mxu0 0
      %346 = vmatmul.mubr.bf16.gmra.mxu0 %v247
      %v347 = vpop.f32.mrf.mxu0
      %v348 = vadd.f32 0.0, %v347
      %v349 = vpop.f32.mrf.mxu0
      %v350 = vpop.f32.mrf.mxu0
      %v351 = vadd.f32 0.0, %v350
      %v352 = vpop.f32.mrf.mxu0
      %353 = vdwg.mxu0
      %v370 = vunpack.c.l.b16 %v229
      %v371 = vunpack.c.l.b16 %v230
      %v372 = vunpack.c.l.b16 %v231
      %v373 = vunpack.c.l.b16 %v232
      %v374 = vunpack.c.l.b16 %v233
      %v375 = vunpack.c.l.b16 %v234
      %v376 = vunpack.c.l.b16 %v235
      %v377 = vunpack.c.l.b16 %v236
      %v378 = vunpack.c.l.b16 %v237
      %v379 = vunpack.c.l.b16 %v238
      %v380 = vunpack.c.l.b16 %v239
      %v381 = vunpack.c.l.b16 %v240
      %v382 = vunpack.c.l.b16 %v241
      %v383 = vunpack.c.l.b16 %v242
      %v384 = vunpack.c.l.b16 %v243
      %v385 = vunpack.c.l.b16 %v244
      %v386 = vpack.c.b16 %v371, %v370
      %v387 = vpack.c.b16 %v373, %v372
      %v388 = vpack.c.b16 %v375, %v374
      %v389 = vpack.c.b16 %v377, %v376
      %v390 = vpack.c.b16 %v379, %v378
      %v391 = vpack.c.b16 %v381, %v380
      %v392 = vpack.c.b16 %v383, %v382
      %v393 = vpack.c.b16 %v385, %v384
      %402 = vmatprep.subr.bf16.mxu0 0
      %403 = vmatpush1.bf16.msra.mxu0 %v393
      %404 = vmatprep.subr.bf16.mxu0 0
      %405 = vmatpush1.bf16.msra.mxu0 %v392
      %406 = vmatprep.subr.bf16.mxu0 0
      %407 = vmatpush1.bf16.msra.mxu0 %v391
      %408 = vmatprep.subr.bf16.mxu0 0
      %409 = vmatpush1.bf16.msra.mxu0 %v390
      %410 = vmatprep.subr.bf16.mxu0 0
      %411 = vmatpush1.bf16.msra.mxu0 %v389
      %412 = vmatprep.subr.bf16.mxu0 0
      %413 = vmatpush1.bf16.msra.mxu0 %v388
      %414 = vmatprep.subr.bf16.mxu0 0
      %415 = vmatpush1.bf16.msra.mxu0 %v387
      %416 = vmatprep.subr.bf16.mxu0 0
      %417 = vmatpush1.bf16.msra.mxu0 %v386
      %418 = vmatprep.subr.bf16.mxu0 0
      %419 = vmatpush2.bf16.msra.mxu0 0
      %420 = vmatprep.subr.bf16.mxu0 0
      %421 = vmatpush2.bf16.msra.mxu0 0
      %422 = vmatprep.subr.bf16.mxu0 0
      %423 = vmatpush2.bf16.msra.mxu0 0
      %424 = vmatprep.subr.bf16.mxu0 0
      %425 = vmatpush2.bf16.msra.mxu0 0
      %426 = vmatprep.subr.bf16.mxu0 0
      %427 = vmatpush2.bf16.msra.mxu0 0
      %428 = vmatprep.subr.bf16.mxu0 0
      %429 = vmatpush2.bf16.msra.mxu0 0
      %430 = vmatprep.subr.bf16.mxu0 0
      %431 = vmatpush2.bf16.msra.mxu0 0
      %432 = vmatprep.subr.bf16.mxu0 0
      %433 = vmatpush2.bf16.msra.mxu0 0
      %434 = vmatprep.mubr.bf16.mxu0 0
      %435 = vmatmul.mubr.bf16.gmra.mxu0 %v228
      %v436 = vpop.f32.mrf.mxu0
      %v437 = vadd.f32 %v348, %v436
      %v438 = vpop.f32.mrf.mxu0
      %v439 = vpop.f32.mrf.mxu0
      %v440 = vadd.f32 %v351, %v439
      %v441 = vpop.f32.mrf.mxu0
      %442 = vdwg.mxu0
      %v443 = vld [vmem:[%s219 + $0x2] sm:$0xff]
      %v444 = vld [vmem:[%s219 + $0xa] sm:$0xff]
      %v445 = vpack.c.bf16 %v444, %v443
      %s446 = scalar_lea.vmem %s1, 128
      %v447 = vld [vmem:[%s446] sm:$0xf]
      %v448 = vld [vmem:[%s446 + $0x4] sm:$0xf]
      %v449 = vld [vmem:[%s446 + $0x8] sm:$0xf]
      %v450 = vld [vmem:[%s446 + $0xc] sm:$0xf]
      %v451 = vld [vmem:[%s446 + $0x10] sm:$0xf]
      %v452 = vld [vmem:[%s446 + $0x14] sm:$0xf]
      %v453 = vld [vmem:[%s446 + $0x18] sm:$0xf]
      %v454 = vld [vmem:[%s446 + $0x1c] sm:$0xf]
      %v455 = vld [vmem:[%s446 + $0x20] sm:$0xf]
      %v456 = vld [vmem:[%s446 + $0x24] sm:$0xf]
      %v457 = vld [vmem:[%s446 + $0x28] sm:$0xf]
      %v458 = vld [vmem:[%s446 + $0x2c] sm:$0xf]
      %v459 = vld [vmem:[%s446 + $0x30] sm:$0xf]
      %v460 = vld [vmem:[%s446 + $0x34] sm:$0xf]
      %v461 = vld [vmem:[%s446 + $0x38] sm:$0xf]
      %v462 = vld [vmem:[%s446 + $0x3c] sm:$0xf]
      %v479 = vunpack.c.l.b16 %v447
      %v480 = vunpack.c.l.b16 %v448
      %v481 = vunpack.c.l.b16 %v449
      %v482 = vunpack.c.l.b16 %v450
      %v483 = vunpack.c.l.b16 %v451
      %v484 = vunpack.c.l.b16 %v452
      %v485 = vunpack.c.l.b16 %v453
      %v486 = vunpack.c.l.b16 %v454
      %v487 = vunpack.c.l.b16 %v455
      %v488 = vunpack.c.l.b16 %v456
      %v489 = vunpack.c.l.b16 %v457
      %v490 = vunpack.c.l.b16 %v458
      %v491 = vunpack.c.l.b16 %v459
      %v492 = vunpack.c.l.b16 %v460
      %v493 = vunpack.c.l.b16 %v461
      %v494 = vunpack.c.l.b16 %v462
      %v495 = vpack.c.b16 %v480, %v479
      %v496 = vpack.c.b16 %v482, %v481
      %v497 = vpack.c.b16 %v484, %v483
      %v498 = vpack.c.b16 %v486, %v485
      %v499 = vpack.c.b16 %v488, %v487
      %v500 = vpack.c.b16 %v490, %v489
      %v501 = vpack.c.b16 %v492, %v491
      %v502 = vpack.c.b16 %v494, %v493
      %511 = vmatprep.subr.bf16.mxu0 0
      %512 = vmatpush1.bf16.msra.mxu0 %v502
      %513 = vmatprep.subr.bf16.mxu0 0
      %514 = vmatpush1.bf16.msra.mxu0 %v501
      %515 = vmatprep.subr.bf16.mxu0 0
      %516 = vmatpush1.bf16.msra.mxu0 %v500
      %517 = vmatprep.subr.bf16.mxu0 0
      %518 = vmatpush1.bf16.msra.mxu0 %v499
      %519 = vmatprep.subr.bf16.mxu0 0
      %520 = vmatpush1.bf16.msra.mxu0 %v498
      %521 = vmatprep.subr.bf16.mxu0 0
      %522 = vmatpush1.bf16.msra.mxu0 %v497
      %523 = vmatprep.subr.bf16.mxu0 0
      %524 = vmatpush1.bf16.msra.mxu0 %v496
      %525 = vmatprep.subr.bf16.mxu0 0
      %526 = vmatpush1.bf16.msra.mxu0 %v495
      %527 = vmatprep.subr.bf16.mxu0 0
      %528 = vmatpush2.bf16.msra.mxu0 0
      %529 = vmatprep.subr.bf16.mxu0 0
      %530 = vmatpush2.bf16.msra.mxu0 0
      %531 = vmatprep.subr.bf16.mxu0 0
      %532 = vmatpush2.bf16.msra.mxu0 0
      %533 = vmatprep.subr.bf16.mxu0 0
      %534 = vmatpush2.bf16.msra.mxu0 0
      %535 = vmatprep.subr.bf16.mxu0 0
      %536 = vmatpush2.bf16.msra.mxu0 0
      %537 = vmatprep.subr.bf16.mxu0 0
      %538 = vmatpush2.bf16.msra.mxu0 0
      %539 = vmatprep.subr.bf16.mxu0 0
      %540 = vmatpush2.bf16.msra.mxu0 0
      %541 = vmatprep.subr.bf16.mxu0 0
      %542 = vmatpush2.bf16.msra.mxu0 0
      %543 = vmatprep.mubr.bf16.mxu0 0
      %544 = vmatmul.mubr.bf16.gmra.mxu0 %v445
      %v545 = vpop.f32.mrf.mxu0
      %v546 = vadd.f32 0.0, %v545
      %v547 = vpop.f32.mrf.mxu0
      %v548 = vpop.f32.mrf.mxu0
      %v549 = vadd.f32 0.0, %v548
      %v550 = vpop.f32.mrf.mxu0
      %551 = vdwg.mxu0
      %v552 = vadd.f32 %v437, %v546
      %v553 = vadd.f32 %v440, %v549
      %v554 = vld [vmem:[%s2] sm:$0x1]
      %v556 = vlaneseq
      %v557 = vshrl.u32 %v556, 7
      %v558 = vsub.s32 0, %v557
      %v559 = vrot.slane %v554, %v558
      %v561 = vadd.f32 %v552, %v559
      %v562 = vadd.f32 %v553, %v559
      %v563 = vmax.f32 %v561, 0.0
      %v564 = vmax.f32 %v562, 0.0
      %565 = vst [vmem:[#allocation2] sm:$0x1] 0.0
      %566 = vst [vmem:[#allocation2 + $0x11] sm:$0x1] 0.0
      %567 = vst [vmem:[#allocation2 + $0x1] sm:$0xff] %v563
      %568 = vst [vmem:[#allocation2 + $0x9] sm:$0xff] %v564
      %v569 = vld [vmem:[#allocation2] sm:$0xff]
      %v570 = vld [vmem:[#allocation2 + $0x8] sm:$0xff]
      %v571 = vpack.c.bf16 %v570, %v569
      %v572 = vld [vmem:[%s3] sm:$0xf]
      %v573 = vld [vmem:[%s3 + $0x4] sm:$0xf]
      %v574 = vld [vmem:[%s3 + $0x8] sm:$0xf]
      %v575 = vld [vmem:[%s3 + $0xc] sm:$0xf]
      %v576 = vld [vmem:[%s3 + $0x10] sm:$0xf]
      %v577 = vld [vmem:[%s3 + $0x14] sm:$0xf]
      %v578 = vld [vmem:[%s3 + $0x18] sm:$0xf]
      %v579 = vld [vmem:[%s3 + $0x1c] sm:$0xf]
      %v580 = vld [vmem:[%s3 + $0x20] sm:$0xf]
      %v581 = vld [vmem:[%s3 + $0x24] sm:$0xf]
      %v582 = vld [vmem:[%s3 + $0x28] sm:$0xf]
      %v583 = vld [vmem:[%s3 + $0x2c] sm:$0xf]
      %v584 = vld [vmem:[%s3 + $0x30] sm:$0xf]
      %v585 = vld [vmem:[%s3 + $0x34] sm:$0xf]
      %v586 = vld [vmem:[%s3 + $0x38] sm:$0xf]
      %v587 = vld [vmem:[%s3 + $0x3c] sm:$0xf]
      %v588 = vld [vmem:[#allocation2 + $0x1] sm:$0xff]
      %v589 = vld [vmem:[#allocation2 + $0x9] sm:$0xff]
      %v590 = vpack.c.bf16 %v589, %v588
      %s591 = scalar_lea.vmem %s3, 64
      %v592 = vld [vmem:[%s591] sm:$0xf]
      %v593 = vld [vmem:[%s591 + $0x4] sm:$0xf]
      %v594 = vld [vmem:[%s591 + $0x8] sm:$0xf]
      %v595 = vld [vmem:[%s591 + $0xc] sm:$0xf]
      %v596 = vld [vmem:[%s591 + $0x10] sm:$0xf]
      %v597 = vld [vmem:[%s591 + $0x14] sm:$0xf]
      %v598 = vld [vmem:[%s591 + $0x18] sm:$0xf]
      %v599 = vld [vmem:[%s591 + $0x1c] sm:$0xf]
      %v600 = vld [vmem:[%s591 + $0x20] sm:$0xf]
      %v601 = vld [vmem:[%s591 + $0x24] sm:$0xf]
      %v602 = vld [vmem:[%s591 + $0x28] sm:$0xf]
      %v603 = vld [vmem:[%s591 + $0x2c] sm:$0xf]
      %v604 = vld [vmem:[%s591 + $0x30] sm:$0xf]
      %v605 = vld [vmem:[%s591 + $0x34] sm:$0xf]
      %v606 = vld [vmem:[%s591 + $0x38] sm:$0xf]
      %v607 = vld [vmem:[%s591 + $0x3c] sm:$0xf]
      %v624 = vunpack.c.l.b16 %v592
      %v625 = vunpack.c.l.b16 %v593
      %v626 = vunpack.c.l.b16 %v594
      %v627 = vunpack.c.l.b16 %v595
      %v628 = vunpack.c.l.b16 %v596
      %v629 = vunpack.c.l.b16 %v597
      %v630 = vunpack.c.l.b16 %v598
      %v631 = vunpack.c.l.b16 %v599
      %v632 = vunpack.c.l.b16 %v600
      %v633 = vunpack.c.l.b16 %v601
      %v634 = vunpack.c.l.b16 %v602
      %v635 = vunpack.c.l.b16 %v603
      %v636 = vunpack.c.l.b16 %v604
      %v637 = vunpack.c.l.b16 %v605
      %v638 = vunpack.c.l.b16 %v606
      %v639 = vunpack.c.l.b16 %v607
      %v640 = vpack.c.b16 %v625, %v624
      %v641 = vpack.c.b16 %v627, %v626
      %v642 = vpack.c.b16 %v629, %v628
      %v643 = vpack.c.b16 %v631, %v630
      %v644 = vpack.c.b16 %v633, %v632
      %v645 = vpack.c.b16 %v635, %v634
      %v646 = vpack.c.b16 %v637, %v636
      %v647 = vpack.c.b16 %v639, %v638
      %656 = vmatprep.subr.bf16.mxu0 0
      %657 = vmatpush1.bf16.msra.mxu0 %v647
      %658 = vmatprep.subr.bf16.mxu0 0
      %659 = vmatpush1.bf16.msra.mxu0 %v646
      %660 = vmatprep.subr.bf16.mxu0 0
      %661 = vmatpush1.bf16.msra.mxu0 %v645
      %662 = vmatprep.subr.bf16.mxu0 0
      %663 = vmatpush1.bf16.msra.mxu0 %v644
      %664 = vmatprep.subr.bf16.mxu0 0
      %665 = vmatpush1.bf16.msra.mxu0 %v643
      %666 = vmatprep.subr.bf16.mxu0 0
      %667 = vmatpush1.bf16.msra.mxu0 %v642
      %668 = vmatprep.subr.bf16.mxu0 0
      %669 = vmatpush1.bf16.msra.mxu0 %v641
      %670 = vmatprep.subr.bf16.mxu0 0
      %671 = vmatpush1.bf16.msra.mxu0 %v640
      %672 = vmatprep.subr.bf16.mxu0 0
      %673 = vmatpush2.bf16.msra.mxu0 0
      %674 = vmatprep.subr.bf16.mxu0 0
      %675 = vmatpush2.bf16.msra.mxu0 0
      %676 = vmatprep.subr.bf16.mxu0 0
      %677 = vmatpush2.bf16.msra.mxu0 0
      %678 = vmatprep.subr.bf16.mxu0 0
      %679 = vmatpush2.bf16.msra.mxu0 0
      %680 = vmatprep.subr.bf16.mxu0 0
      %681 = vmatpush2.bf16.msra.mxu0 0
      %682 = vmatprep.subr.bf16.mxu0 0
      %683 = vmatpush2.bf16.msra.mxu0 0
      %684 = vmatprep.subr.bf16.mxu0 0
      %685 = vmatpush2.bf16.msra.mxu0 0
      %686 = vmatprep.subr.bf16.mxu0 0
      %687 = vmatpush2.bf16.msra.mxu0 0
      %688 = vmatprep.mubr.bf16.mxu0 0
      %689 = vmatmul.mubr.bf16.gmra.mxu0 %v590
      %v690 = vpop.f32.mrf.mxu0
      %v691 = vadd.f32 0.0, %v690
      %v692 = vpop.f32.mrf.mxu0
      %v693 = vpop.f32.mrf.mxu0
      %v694 = vadd.f32 0.0, %v693
      %v695 = vpop.f32.mrf.mxu0
      %696 = vdwg.mxu0
      %v713 = vunpack.c.l.b16 %v572
      %v714 = vunpack.c.l.b16 %v573
      %v715 = vunpack.c.l.b16 %v574
      %v716 = vunpack.c.l.b16 %v575
      %v717 = vunpack.c.l.b16 %v576
      %v718 = vunpack.c.l.b16 %v577
      %v719 = vunpack.c.l.b16 %v578
      %v720 = vunpack.c.l.b16 %v579
      %v721 = vunpack.c.l.b16 %v580
      %v722 = vunpack.c.l.b16 %v581
      %v723 = vunpack.c.l.b16 %v582
      %v724 = vunpack.c.l.b16 %v583
      %v725 = vunpack.c.l.b16 %v584
      %v726 = vunpack.c.l.b16 %v585
      %v727 = vunpack.c.l.b16 %v586
      %v728 = vunpack.c.l.b16 %v587
      %v729 = vpack.c.b16 %v714, %v713
      %v730 = vpack.c.b16 %v716, %v715
      %v731 = vpack.c.b16 %v718, %v717
      %v732 = vpack.c.b16 %v720, %v719
      %v733 = vpack.c.b16 %v722, %v721
      %v734 = vpack.c.b16 %v724, %v723
      %v735 = vpack.c.b16 %v726, %v725
      %v736 = vpack.c.b16 %v728, %v727
      %745 = vmatprep.subr.bf16.mxu0 0
      %746 = vmatpush1.bf16.msra.mxu0 %v736
      %747 = vmatprep.subr.bf16.mxu0 0
      %748 = vmatpush1.bf16.msra.mxu0 %v735
      %749 = vmatprep.subr.bf16.mxu0 0
      %750 = vmatpush1.bf16.msra.mxu0 %v734
      %751 = vmatprep.subr.bf16.mxu0 0
      %752 = vmatpush1.bf16.msra.mxu0 %v733
      %753 = vmatprep.subr.bf16.mxu0 0
      %754 = vmatpush1.bf16.msra.mxu0 %v732
      %755 = vmatprep.subr.bf16.mxu0 0
      %756 = vmatpush1.bf16.msra.mxu0 %v731
      %757 = vmatprep.subr.bf16.mxu0 0
      %758 = vmatpush1.bf16.msra.mxu0 %v730
      %759 = vmatprep.subr.bf16.mxu0 0
      %760 = vmatpush1.bf16.msra.mxu0 %v729
      %761 = vmatprep.subr.bf16.mxu0 0
      %762 = vmatpush2.bf16.msra.mxu0 0
      %763 = vmatprep.subr.bf16.mxu0 0
      %764 = vmatpush2.bf16.msra.mxu0 0
      %765 = vmatprep.subr.bf16.mxu0 0
      %766 = vmatpush2.bf16.msra.mxu0 0
      %767 = vmatprep.subr.bf16.mxu0 0
      %768 = vmatpush2.bf16.msra.mxu0 0
      %769 = vmatprep.subr.bf16.mxu0 0
      %770 = vmatpush2.bf16.msra.mxu0 0
      %771 = vmatprep.subr.bf16.mxu0 0
      %772 = vmatpush2.bf16.msra.mxu0 0
      %773 = vmatprep.subr.bf16.mxu0 0
      %774 = vmatpush2.bf16.msra.mxu0 0
      %775 = vmatprep.subr.bf16.mxu0 0
      %776 = vmatpush2.bf16.msra.mxu0 0
      %777 = vmatprep.mubr.bf16.mxu0 0
      %778 = vmatmul.mubr.bf16.gmra.mxu0 %v571
      %v779 = vpop.f32.mrf.mxu0
      %v780 = vadd.f32 %v691, %v779
      %v781 = vpop.f32.mrf.mxu0
      %v782 = vpop.f32.mrf.mxu0
      %v783 = vadd.f32 %v694, %v782
      %v784 = vpop.f32.mrf.mxu0
      %785 = vdwg.mxu0
      %v786 = vld [vmem:[#allocation2 + $0x2] sm:$0xff]
      %v787 = vld [vmem:[#allocation2 + $0xa] sm:$0xff]
      %v788 = vpack.c.bf16 %v787, %v786
      %s789 = scalar_lea.vmem %s3, 128
      %v790 = vld [vmem:[%s789] sm:$0xf]
      %v791 = vld [vmem:[%s789 + $0x4] sm:$0xf]
      %v792 = vld [vmem:[%s789 + $0x8] sm:$0xf]
      %v793 = vld [vmem:[%s789 + $0xc] sm:$0xf]
      %v794 = vld [vmem:[%s789 + $0x10] sm:$0xf]
      %v795 = vld [vmem:[%s789 + $0x14] sm:$0xf]
      %v796 = vld [vmem:[%s789 + $0x18] sm:$0xf]
      %v797 = vld [vmem:[%s789 + $0x1c] sm:$0xf]
      %v798 = vld [vmem:[%s789 + $0x20] sm:$0xf]
      %v799 = vld [vmem:[%s789 + $0x24] sm:$0xf]
      %v800 = vld [vmem:[%s789 + $0x28] sm:$0xf]
      %v801 = vld [vmem:[%s789 + $0x2c] sm:$0xf]
      %v802 = vld [vmem:[%s789 + $0x30] sm:$0xf]
      %v803 = vld [vmem:[%s789 + $0x34] sm:$0xf]
      %v804 = vld [vmem:[%s789 + $0x38] sm:$0xf]
      %v805 = vld [vmem:[%s789 + $0x3c] sm:$0xf]
      %v822 = vunpack.c.l.b16 %v790
      %v823 = vunpack.c.l.b16 %v791
      %v824 = vunpack.c.l.b16 %v792
      %v825 = vunpack.c.l.b16 %v793
      %v826 = vunpack.c.l.b16 %v794
      %v827 = vunpack.c.l.b16 %v795
      %v828 = vunpack.c.l.b16 %v796
      %v829 = vunpack.c.l.b16 %v797
      %v830 = vunpack.c.l.b16 %v798
      %v831 = vunpack.c.l.b16 %v799
      %v832 = vunpack.c.l.b16 %v800
      %v833 = vunpack.c.l.b16 %v801
      %v834 = vunpack.c.l.b16 %v802
      %v835 = vunpack.c.l.b16 %v803
      %v836 = vunpack.c.l.b16 %v804
      %v837 = vunpack.c.l.b16 %v805
      %v838 = vpack.c.b16 %v823, %v822
      %v839 = vpack.c.b16 %v825, %v824
      %v840 = vpack.c.b16 %v827, %v826
      %v841 = vpack.c.b16 %v829, %v828
      %v842 = vpack.c.b16 %v831, %v830
      %v843 = vpack.c.b16 %v833, %v832
      %v844 = vpack.c.b16 %v835, %v834
      %v845 = vpack.c.b16 %v837, %v836
      %854 = vmatprep.subr.bf16.mxu0 0
      %855 = vmatpush1.bf16.msra.mxu0 %v845
      %856 = vmatprep.subr.bf16.mxu0 0
      %857 = vmatpush1.bf16.msra.mxu0 %v844
      %858 = vmatprep.subr.bf16.mxu0 0
      %859 = vmatpush1.bf16.msra.mxu0 %v843
      %860 = vmatprep.subr.bf16.mxu0 0
      %861 = vmatpush1.bf16.msra.mxu0 %v842
      %862 = vmatprep.subr.bf16.mxu0 0
      %863 = vmatpush1.bf16.msra.mxu0 %v841
      %864 = vmatprep.subr.bf16.mxu0 0
      %865 = vmatpush1.bf16.msra.mxu0 %v840
      %866 = vmatprep.subr.bf16.mxu0 0
      %867 = vmatpush1.bf16.msra.mxu0 %v839
      %868 = vmatprep.subr.bf16.mxu0 0
      %869 = vmatpush1.bf16.msra.mxu0 %v838
      %870 = vmatprep.subr.bf16.mxu0 0
      %871 = vmatpush2.bf16.msra.mxu0 0
      %872 = vmatprep.subr.bf16.mxu0 0
      %873 = vmatpush2.bf16.msra.mxu0 0
      %874 = vmatprep.subr.bf16.mxu0 0
      %875 = vmatpush2.bf16.msra.mxu0 0
      %876 = vmatprep.subr.bf16.mxu0 0
      %877 = vmatpush2.bf16.msra.mxu0 0
      %878 = vmatprep.subr.bf16.mxu0 0
      %879 = vmatpush2.bf16.msra.mxu0 0
      %880 = vmatprep.subr.bf16.mxu0 0
      %881 = vmatpush2.bf16.msra.mxu0 0
      %882 = vmatprep.subr.bf16.mxu0 0
      %883 = vmatpush2.bf16.msra.mxu0 0
      %884 = vmatprep.subr.bf16.mxu0 0
      %885 = vmatpush2.bf16.msra.mxu0 0
      %886 = vmatprep.mubr.bf16.mxu0 0
      %887 = vmatmul.mubr.bf16.gmra.mxu0 %v788
      %v888 = vpop.f32.mrf.mxu0
      %v889 = vadd.f32 0.0, %v888
      %v890 = vpop.f32.mrf.mxu0
      %v891 = vpop.f32.mrf.mxu0
      %v892 = vadd.f32 0.0, %v891
      %v893 = vpop.f32.mrf.mxu0
      %894 = vdwg.mxu0
      %v895 = vadd.f32 %v780, %v889
      %v896 = vadd.f32 %v783, %v892
      %v897 = vld [vmem:[%s219 + $0x1] sm:$0xff]
      %v898 = vld [vmem:[%s219 + $0x9] sm:$0xff]
      %v899 = vld [vmem:[%s4] sm:$0x1]
      %v901 = vlaneseq
      %v902 = vshrl.u32 %v901, 7
      %v903 = vsub.s32 0, %v902
      %v904 = vrot.slane %v899, %v903
      %v906 = vadd.f32 %v895, %v904
      %v907 = vadd.f32 %v896, %v904
      %v908 = vadd.f32 %v906, %v897
      %v909 = vadd.f32 %v907, %v898
      %910 = vst [vmem:[%s224] sm:$0xff] %v908
      %911 = vst [vmem:[%s224 + $0x8] sm:$0xff] %v909
      %p912 = scmp.lt.s32.totalorder %s16, 1
      %s913 = scalar_select %p912, %s16, 1
      %s914 = smul.addr %s913, 2
      %s915 = smul.addr %s914, 8
      %s916 = scalar_lea.vmem %s5, %s915
      // Predicated region
      $region41: #{residual_block.1} parent=39 // pred_check
        %p917 = pneg %p144
      $region42: #{residual_block.1} parent=39 // pred_check_branch
        %919 = sbr.rel (%p917) target = $region44
      $region43: #{residual_block.1} parent=39 // pred_region
        _
      $region44: #{residual_block.1} parent=39 // pred_fallthru
        _
    $region40: #{residual_block.1} parent=5 // pred_fallthru
      _
    %p920 = scmp.le.s32.totalorder 2, %s11
    // Predicated region
    $region45: #{residual_block.1} parent=5 // pred_check
      %p921 = pneg %p920
    $region46: #{residual_block.1} parent=5 // pred_check_branch
      %923 = sbr.rel (%p921) target = $region48
    $region47: #{residual_block.1} parent=5 // pred_region
      %s924 = ssub.s32 %s11, 2
      // Predicated region
      $region49: #{residual_block.1} parent=47 // pred_check
        %p925 = pneg %p150
      $region50: #{residual_block.1} parent=47 // pred_check_branch
        %927 = sbr.rel (%p925) target = $region52
      $region51: #{residual_block.1} parent=47 // pred_region
        %p928 = scmp.lt.s32.totalorder %s17, 1
        %s929 = scalar_select %p928, %s17, 1
        %s930 = smul.addr %s929, 2
        %s931 = smul.addr %s930, 8
        %s932 = scalar_lea.vmem %s5, %s931
      $region52: #{residual_block.1} parent=47 // pred_fallthru
        _
    $region48: #{residual_block.1} parent=5 // pred_fallthru
      _
  $region6: #{residual_block.1} parent=0 // loop_footer
    %s15 = sadd.s32 1, %s11
  $region7: #{residual_block.1} parent=0 // loop_footer_branch
    %10 = sbr.rel target = $region3
  $region8: #{residual_block.1} parent=0 // loop_exit
    _

</llo_original>
